<compile_context>
chip_gen: v5e
topology: v5e:2x2
jax: 0.10.0
libtpu: 0.0.40
codegen_flags: <defaults>
</compile_context>

<pallas_src>
import functools

import jax
import jax.numpy as jnp
from jax.experimental import pallas as pl
from jax.experimental.pallas import tpu as pltpu

DMA_SLOTS = 8            # row copies kept in flight per grid step
DEFAULT_MAX_BLOCK = 512  # tokens per grid step before the per-chip VMEM cap


def _round_up(x, m):
    return ((x + m - 1) // m) * m


def _embed_gather_kernel(ids_ref, table_ref, out_ref, sem, *, dma_slots):
    # ids_ref   : SMEM (padded_tokens,) int32    flat token ids (scalar prefetch)
    # table_ref : HBM  (vocab, d_model)          embedding table, never copied whole
    # out_ref   : VMEM (block, d_model)          output tile for this grid step
    # sem       : DMA semaphores (dma_slots,)
    # No compute: keep `slots` row DMAs in flight, landing rows directly in the
    # pipelined output tile (bit-exact gather).
    block = out_ref.shape[0]
    base = pl.program_id(0) * block
    slots = min(dma_slots, block)

    def row_copy(t, slot):
        row = ids_ref[base + t]
        return pltpu.make_async_copy(
            table_ref.at[pl.ds(row, 1), :],
            out_ref.at[pl.ds(t, 1), :],
            sem.at[slot],
        )

    # Prime: fill all DMA slots (static unroll, `slots` is small).
    for t in range(slots):
        row_copy(t, t).start()

    # Steady state: recycle the oldest slot, then issue token t on it.
    @pl.loop(slots, block)
    def _(t):
        slot = t % slots
        row_copy(t - slots, slot).wait()
        row_copy(t, slot).start()

    # Drain the last `slots` in-flight copies.
    @pl.loop(max(block - slots, 0), block)
    def _(t):
        row_copy(t, t % slots).wait()


def embedder_forward(x, table, *, max_tokens_per_block=DEFAULT_MAX_BLOCK,
                     dma_slots=DMA_SLOTS):
    """Pallas equivalent of `nn.Embedding(vocab, d_model)(x)` (HBM row gather).

    x     : (batch, seq) integer token ids
    table : (vocab, d_model) embedding weights
    returns (batch, seq, d_model) with table.dtype, bit-exact row copies.
    """
    batch, seq = x.shape
    vocab, d_model = table.shape
    num_tokens = batch * seq
    itemsize = jnp.dtype(table.dtype).itemsize

    # Only the double-buffered (block, d_model) output tile lives in VMEM; size it
    # from the actual chip (64 MiB/TC on v7x vs 128 MiB on v5e/v6e), staying <=25%.
    try:
        vmem_cap = pltpu.get_tpu_info().vmem_capacity_bytes
    except Exception:  # conservative fallback = v7x per-TC VMEM
        vmem_cap = 64 * 1024 * 1024
    vmem_block_cap = max(8, ((vmem_cap // 4) // (2 * d_model * itemsize)) // 8 * 8)

    # >=2 grid steps whenever there is enough work, so dimension_semantics=
    # ("parallel",) can split token blocks across v7x's two TensorCores
    # (neutral on single-TC v5e/v6e).
    half = _round_up(max((num_tokens + 1) // 2, 1), 8)
    block = max(8, min(max_tokens_per_block, vmem_block_cap, half))

    padded = _round_up(num_tokens, block)
    grid = padded // block

    # Flat ids for scalar prefetch.  Clamp out-of-range / negative ids so the row
    # DMA can never read out of bounds (PyTorch raises; we clamp -- see notes).
    ids = jnp.clip(x.reshape(num_tokens).astype(jnp.int32), 0, vocab - 1)
    if padded != num_tokens:
        ids = jnp.pad(ids, (0, padded - num_tokens))  # padding gathers row 0, sliced off

    kernel = functools.partial(_embed_gather_kernel, dma_slots=dma_slots)

    out_flat = pl.pallas_call(
        kernel,
        out_shape=jax.ShapeDtypeStruct((padded, d_model), table.dtype),
        grid_spec=pltpu.PrefetchScalarGridSpec(
            num_scalar_prefetch=1,
            grid=(grid,),
            in_specs=[pl.BlockSpec(memory_space=pl.ANY)],  # table stays in HBM
            out_specs=pl.BlockSpec((block, d_model), lambda i, ids_ref: (i, 0)),
            scratch_shapes=[pltpu.SemaphoreType.DMA((dma_slots,))],
        ),
        compiler_params=pltpu.CompilerParams(dimension_semantics=("parallel",)),
    )(ids, table)

    return out_flat[:num_tokens].reshape(batch, seq, d_model)


if __name__ == "__main__":
    key = jax.random.PRNGKey(0)
    k_w, k_x, k_x2, k_w3, k_x3 = jax.random.split(key, 5)

    vocab_size, d_model = 32, 128

    # Deterministic "weights" argument of Embedder.__init__
    weights = jax.random.normal(k_w, (vocab_size, d_model), dtype=jnp.float32)

    # Case 1: original small shape (batch=2, seq=8) -- bit-exact gather expected.
    batch, seq = 2, 8
    x = jax.random.randint(k_x, (batch, seq), 0, vocab_size, dtype=jnp.int32)
    out = jax.block_until_ready(embedder_forward(x, weights))
    ref = jnp.take(weights, x.reshape(-1), axis=0).reshape(batch, seq, d_model)
    assert out.shape == (batch, seq, d_model)
    assert out.dtype == weights.dtype
    assert bool(jnp.array_equal(out, ref)), "Pallas embedding mismatch (case 1)"

    # Case 2: ragged token count (batch*seq not a multiple of the block) -> padded tail.
    batch2, seq2 = 3, 5
    x2 = jax.random.randint(k_x2, (batch2, seq2), 0, vocab_size, dtype=jnp.int32)
    out2 = jax.block_until_ready(embedder_forward(x2, weights))
    ref2 = jnp.take(weights, x2.reshape(-1), axis=0).reshape(batch2, seq2, d_model)
    assert out2.shape == (batch2, seq2, d_model)
    assert bool(jnp.array_equal(out2, ref2)), "Pallas embedding mismatch (case 2)"

    # Case 3: larger vocab + multi-block grid exercising the HBM gather path.
    vocab3, d3 = 512, 256
    weights3 = jax.random.normal(k_w3, (vocab3, d3), dtype=jnp.float32)
    batch3, seq3 = 4, 24
    x3 = jax.random.randint(k_x3, (batch3, seq3), 0, vocab3, dtype=jnp.int32)
    out3 = jax.block_until_ready(embedder_forward(x3, weights3))
    ref3 = jnp.take(weights3, x3.reshape(-1), axis=0).reshape(batch3, seq3, d3)
    assert bool(jnp.array_equal(out3, ref3)), "Pallas embedding mismatch (case 3)"

    print("KERNEL_OK")
</pallas_src>

<mosaic_0001>
module attributes {stable_mosaic.version = 11 : i64} {
  func.func @_embed_gather_kernel(%arg0: i32, %arg1: memref<16xi32, #tpu.memory_space<smem>>, %arg2: memref<32x128xf32, #tpu.memory_space<any>>, %arg3: memref<8x128xf32, #tpu.memory_space<vmem>>, %arg4: memref<8x!tpu.dma_semaphore, #tpu.memory_space<semaphore_mem>>) attributes {dimension_semantics = [#tpu.dimension_semantics<parallel>], iteration_bounds = array<i64: 2>, scalar_prefetch = 1 : i64, scratch_operands = 1 : i64, tpu.core_type = #tpu.core_type<tc>, window_params = [{}, {transform_indices = @transform_1, window_bounds = array<i64: 8, 128>}]} {
    %c8_i32 = arith.constant 8 : i32
    %0 = arith.muli %arg0, %c8_i32 : i32
    %c0_i32 = arith.constant 0 : i32
    %1 = arith.addi %0, %c0_i32 : i32
    %2 = arith.index_cast %1 : i32 to index
    %3 = memref.load %arg1[%2] : memref<16xi32, #tpu.memory_space<smem>>
    %c0_i32_0 = arith.constant 0 : i32
    %c0_i32_1 = arith.constant 0 : i32
    %4 = tpu.memref_slice %arg2[%3, %c0_i32_1] : memref<32x128xf32, #tpu.memory_space<any>> -> memref<1x128xf32, #tpu.memory_space<any>>
    %c0_i32_2 = arith.constant 0 : i32
    %c0_i32_3 = arith.constant 0 : i32
    %5 = tpu.memref_slice %arg3[%c0_i32_2, %c0_i32_3] : memref<8x128xf32, #tpu.memory_space<vmem>> -> memref<1x128xf32, #tpu.memory_space<vmem>>
    %6 = tpu.memref_slice %arg4[%c0_i32_0] : memref<8x!tpu.dma_semaphore, #tpu.memory_space<semaphore_mem>> -> memref<1x!tpu.dma_semaphore, #tpu.memory_space<semaphore_mem>>
    %7 = tpu.memref_squeeze %6 : memref<1x!tpu.dma_semaphore, #tpu.memory_space<semaphore_mem>> -> memref<!tpu.dma_semaphore, #tpu.memory_space<semaphore_mem>>
    tpu.enqueue_dma source(%4 : memref<1x128xf32, #tpu.memory_space<any>>) target(%5 : memref<1x128xf32, #tpu.memory_space<vmem>>) target_semaphore(%7 : memref<!tpu.dma_semaphore, #tpu.memory_space<semaphore_mem>>)
    %c1_i32 = arith.constant 1 : i32
    %8 = arith.addi %0, %c1_i32 : i32
    %9 = arith.index_cast %8 : i32 to index
    %10 = memref.load %arg1[%9] : memref<16xi32, #tpu.memory_space<smem>>
    %c1_i32_4 = arith.constant 1 : i32
    %c0_i32_5 = arith.constant 0 : i32
    %11 = tpu.memref_slice %arg2[%10, %c0_i32_5] : memref<32x128xf32, #tpu.memory_space<any>> -> memref<1x128xf32, #tpu.memory_space<any>>
    %c1_i32_6 = arith.constant 1 : i32
    %c0_i32_7 = arith.constant 0 : i32
    %12 = tpu.memref_slice %arg3[%c1_i32_6, %c0_i32_7] : memref<8x128xf32, #tpu.memory_space<vmem>> -> memref<1x128xf32, #tpu.memory_space<vmem>>
    %13 = tpu.memref_slice %arg4[%c1_i32_4] : memref<8x!tpu.dma_semaphore, #tpu.memory_space<semaphore_mem>> -> memref<1x!tpu.dma_semaphore, #tpu.memory_space<semaphore_mem>>
    %14 = tpu.memref_squeeze %13 : memref<1x!tpu.dma_semaphore, #tpu.memory_space<semaphore_mem>> -> memref<!tpu.dma_semaphore, #tpu.memory_space<semaphore_mem>>
    tpu.enqueue_dma source(%11 : memref<1x128xf32, #tpu.memory_space<any>>) target(%12 : memref<1x128xf32, #tpu.memory_space<vmem>>) target_semaphore(%14 : memref<!tpu.dma_semaphore, #tpu.memory_space<semaphore_mem>>)
    %c2_i32 = arith.constant 2 : i32
    %15 = arith.addi %0, %c2_i32 : i32
    %16 = arith.index_cast %15 : i32 to index
    %17 = memref.load %arg1[%16] : memref<16xi32, #tpu.memory_space<smem>>
    %c2_i32_8 = arith.constant 2 : i32
    %c0_i32_9 = arith.constant 0 : i32
    %18 = tpu.memref_slice %arg2[%17, %c0_i32_9] : memref<32x128xf32, #tpu.memory_space<any>> -> memref<1x128xf32, #tpu.memory_space<any>>
    %c2_i32_10 = arith.constant 2 : i32
    %c0_i32_11 = arith.constant 0 : i32
    %19 = tpu.memref_slice %arg3[%c2_i32_10, %c0_i32_11] : memref<8x128xf32, #tpu.memory_space<vmem>> -> memref<1x128xf32, #tpu.memory_space<vmem>>
    %20 = tpu.memref_slice %arg4[%c2_i32_8] : memref<8x!tpu.dma_semaphore, #tpu.memory_space<semaphore_mem>> -> memref<1x!tpu.dma_semaphore, #tpu.memory_space<semaphore_mem>>
    %21 = tpu.memref_squeeze %20 : memref<1x!tpu.dma_semaphore, #tpu.memory_space<semaphore_mem>> -> memref<!tpu.dma_semaphore, #tpu.memory_space<semaphore_mem>>
    tpu.enqueue_dma source(%18 : memref<1x128xf32, #tpu.memory_space<any>>) target(%19 : memref<1x128xf32, #tpu.memory_space<vmem>>) target_semaphore(%21 : memref<!tpu.dma_semaphore, #tpu.memory_space<semaphore_mem>>)
    %c3_i32 = arith.constant 3 : i32
    %22 = arith.addi %0, %c3_i32 : i32
    %23 = arith.index_cast %22 : i32 to index
    %24 = memref.load %arg1[%23] : memref<16xi32, #tpu.memory_space<smem>>
    %c3_i32_12 = arith.constant 3 : i32
    %c0_i32_13 = arith.constant 0 : i32
    %25 = tpu.memref_slice %arg2[%24, %c0_i32_13] : memref<32x128xf32, #tpu.memory_space<any>> -> memref<1x128xf32, #tpu.memory_space<any>>
    %c3_i32_14 = arith.constant 3 : i32
    %c0_i32_15 = arith.constant 0 : i32
    %26 = tpu.memref_slice %arg3[%c3_i32_14, %c0_i32_15] : memref<8x128xf32, #tpu.memory_space<vmem>> -> memref<1x128xf32, #tpu.memory_space<vmem>>
    %27 = tpu.memref_slice %arg4[%c3_i32_12] : memref<8x!tpu.dma_semaphore, #tpu.memory_space<semaphore_mem>> -> memref<1x!tpu.dma_semaphore, #tpu.memory_space<semaphore_mem>>
    %28 = tpu.memref_squeeze %27 : memref<1x!tpu.dma_semaphore, #tpu.memory_space<semaphore_mem>> -> memref<!tpu.dma_semaphore, #tpu.memory_space<semaphore_mem>>
    tpu.enqueue_dma source(%25 : memref<1x128xf32, #tpu.memory_space<any>>) target(%26 : memref<1x128xf32, #tpu.memory_space<vmem>>) target_semaphore(%28 : memref<!tpu.dma_semaphore, #tpu.memory_space<semaphore_mem>>)
    %c4_i32 = arith.constant 4 : i32
    %29 = arith.addi %0, %c4_i32 : i32
    %30 = arith.index_cast %29 : i32 to index
    %31 = memref.load %arg1[%30] : memref<16xi32, #tpu.memory_space<smem>>
    %c4_i32_16 = arith.constant 4 : i32
    %c0_i32_17 = arith.constant 0 : i32
    %32 = tpu.memref_slice %arg2[%31, %c0_i32_17] : memref<32x128xf32, #tpu.memory_space<any>> -> memref<1x128xf32, #tpu.memory_space<any>>
    %c4_i32_18 = arith.constant 4 : i32
    %c0_i32_19 = arith.constant 0 : i32
    %33 = tpu.memref_slice %arg3[%c4_i32_18, %c0_i32_19] : memref<8x128xf32, #tpu.memory_space<vmem>> -> memref<1x128xf32, #tpu.memory_space<vmem>>
    %34 = tpu.memref_slice %arg4[%c4_i32_16] : memref<8x!tpu.dma_semaphore, #tpu.memory_space<semaphore_mem>> -> memref<1x!tpu.dma_semaphore, #tpu.memory_space<semaphore_mem>>
    %35 = tpu.memref_squeeze %34 : memref<1x!tpu.dma_semaphore, #tpu.memory_space<semaphore_mem>> -> memref<!tpu.dma_semaphore, #tpu.memory_space<semaphore_mem>>
    tpu.enqueue_dma source(%32 : memref<1x128xf32, #tpu.memory_space<any>>) target(%33 : memref<1x128xf32, #tpu.memory_space<vmem>>) target_semaphore(%35 : memref<!tpu.dma_semaphore, #tpu.memory_space<semaphore_mem>>)
    %c5_i32 = arith.constant 5 : i32
    %36 = arith.addi %0, %c5_i32 : i32
    %37 = arith.index_cast %36 : i32 to index
    %38 = memref.load %arg1[%37] : memref<16xi32, #tpu.memory_space<smem>>
    %c5_i32_20 = arith.constant 5 : i32
    %c0_i32_21 = arith.constant 0 : i32
    %39 = tpu.memref_slice %arg2[%38, %c0_i32_21] : memref<32x128xf32, #tpu.memory_space<any>> -> memref<1x128xf32, #tpu.memory_space<any>>
    %c5_i32_22 = arith.constant 5 : i32
    %c0_i32_23 = arith.constant 0 : i32
    %40 = tpu.memref_slice %arg3[%c5_i32_22, %c0_i32_23] : memref<8x128xf32, #tpu.memory_space<vmem>> -> memref<1x128xf32, #tpu.memory_space<vmem>>
    %41 = tpu.memref_slice %arg4[%c5_i32_20] : memref<8x!tpu.dma_semaphore, #tpu.memory_space<semaphore_mem>> -> memref<1x!tpu.dma_semaphore, #tpu.memory_space<semaphore_mem>>
    %42 = tpu.memref_squeeze %41 : memref<1x!tpu.dma_semaphore, #tpu.memory_space<semaphore_mem>> -> memref<!tpu.dma_semaphore, #tpu.memory_space<semaphore_mem>>
    tpu.enqueue_dma source(%39 : memref<1x128xf32, #tpu.memory_space<any>>) target(%40 : memref<1x128xf32, #tpu.memory_space<vmem>>) target_semaphore(%42 : memref<!tpu.dma_semaphore, #tpu.memory_space<semaphore_mem>>)
    %c6_i32 = arith.constant 6 : i32
    %43 = arith.addi %0, %c6_i32 : i32
    %44 = arith.index_cast %43 : i32 to index
    %45 = memref.load %arg1[%44] : memref<16xi32, #tpu.memory_space<smem>>
    %c6_i32_24 = arith.constant 6 : i32
    %c0_i32_25 = arith.constant 0 : i32
    %46 = tpu.memref_slice %arg2[%45, %c0_i32_25] : memref<32x128xf32, #tpu.memory_space<any>> -> memref<1x128xf32, #tpu.memory_space<any>>
    %c6_i32_26 = arith.constant 6 : i32
    %c0_i32_27 = arith.constant 0 : i32
    %47 = tpu.memref_slice %arg3[%c6_i32_26, %c0_i32_27] : memref<8x128xf32, #tpu.memory_space<vmem>> -> memref<1x128xf32, #tpu.memory_space<vmem>>
    %48 = tpu.memref_slice %arg4[%c6_i32_24] : memref<8x!tpu.dma_semaphore, #tpu.memory_space<semaphore_mem>> -> memref<1x!tpu.dma_semaphore, #tpu.memory_space<semaphore_mem>>
    %49 = tpu.memref_squeeze %48 : memref<1x!tpu.dma_semaphore, #tpu.memory_space<semaphore_mem>> -> memref<!tpu.dma_semaphore, #tpu.memory_space<semaphore_mem>>
    tpu.enqueue_dma source(%46 : memref<1x128xf32, #tpu.memory_space<any>>) target(%47 : memref<1x128xf32, #tpu.memory_space<vmem>>) target_semaphore(%49 : memref<!tpu.dma_semaphore, #tpu.memory_space<semaphore_mem>>)
    %c7_i32 = arith.constant 7 : i32
    %50 = arith.addi %0, %c7_i32 : i32
    %51 = arith.index_cast %50 : i32 to index
    %52 = memref.load %arg1[%51] : memref<16xi32, #tpu.memory_space<smem>>
    %c7_i32_28 = arith.constant 7 : i32
    %c0_i32_29 = arith.constant 0 : i32
    %53 = tpu.memref_slice %arg2[%52, %c0_i32_29] : memref<32x128xf32, #tpu.memory_space<any>> -> memref<1x128xf32, #tpu.memory_space<any>>
    %c7_i32_30 = arith.constant 7 : i32
    %c0_i32_31 = arith.constant 0 : i32
    %54 = tpu.memref_slice %arg3[%c7_i32_30, %c0_i32_31] : memref<8x128xf32, #tpu.memory_space<vmem>> -> memref<1x128xf32, #tpu.memory_space<vmem>>
    %55 = tpu.memref_slice %arg4[%c7_i32_28] : memref<8x!tpu.dma_semaphore, #tpu.memory_space<semaphore_mem>> -> memref<1x!tpu.dma_semaphore, #tpu.memory_space<semaphore_mem>>
    %56 = tpu.memref_squeeze %55 : memref<1x!tpu.dma_semaphore, #tpu.memory_space<semaphore_mem>> -> memref<!tpu.dma_semaphore, #tpu.memory_space<semaphore_mem>>
    tpu.enqueue_dma source(%53 : memref<1x128xf32, #tpu.memory_space<any>>) target(%54 : memref<1x128xf32, #tpu.memory_space<vmem>>) target_semaphore(%56 : memref<!tpu.dma_semaphore, #tpu.memory_space<semaphore_mem>>)
    %c0_i32_32 = arith.constant 0 : i32
    %c0_i32_33 = arith.constant 0 : i32
    %57 = arith.addi %c0_i32_32, %c0_i32_33 : i32
    %c1_i32_34 = arith.constant 1 : i32
    scf.for %arg5 = %c0_i32_32 to %57 step %c1_i32_34  : i32 {
      %c1_i32_40 = arith.constant 1 : i32
      %59 = arith.muli %arg5, %c1_i32_40 : i32
      %c8_i32_41 = arith.constant 8 : i32
      %60 = arith.addi %c8_i32_41, %59 : i32
      %c8_i32_42 = arith.constant 8 : i32
      %c0_i32_43 = arith.constant 0 : i32
      %61 = arith.cmpi eq, %c8_i32_42, %c0_i32_43 : i32
      %c1_i32_44 = arith.constant 1 : i32
      %62 = arith.select %61, %c1_i32_44, %c8_i32_42 : i32
      %63 = arith.remsi %60, %62 : i32
      %c0_i32_45 = arith.constant 0 : i32
      %64 = arith.cmpi ne, %63, %c0_i32_45 : i32
      %c0_i32_46 = arith.constant 0 : i32
      %65 = arith.cmpi slt, %63, %c0_i32_46 : i32
      %c0_i32_47 = arith.constant 0 : i32
      %66 = arith.cmpi slt, %62, %c0_i32_47 : i32
      %67 = arith.xori %65, %66 : i1
      %68 = arith.andi %67, %64 : i1
      %69 = arith.addi %63, %62 : i32
      %70 = arith.select %68, %69, %63 : i32
      %c8_i32_48 = arith.constant 8 : i32
      %71 = arith.subi %60, %c8_i32_48 : i32
      %72 = arith.addi %0, %71 : i32
      %73 = arith.index_cast %72 : i32 to index
      %74 = memref.load %arg1[%73] : memref<16xi32, #tpu.memory_space<smem>>
      %c0_i32_49 = arith.constant 0 : i32
      %75 = tpu.memref_slice %arg2[%74, %c0_i32_49] : memref<32x128xf32, #tpu.memory_space<any>> -> memref<1x128xf32, #tpu.memory_space<any>>
      %c0_i32_50 = arith.constant 0 : i32
      %76 = tpu.memref_slice %arg3[%71, %c0_i32_50] : memref<8x128xf32, #tpu.memory_space<vmem>> -> memref<1x128xf32, #tpu.memory_space<vmem>>
      %77 = tpu.memref_slice %arg4[%70] : memref<8x!tpu.dma_semaphore, #tpu.memory_space<semaphore_mem>> -> memref<1x!tpu.dma_semaphore, #tpu.memory_space<semaphore_mem>>
      %78 = tpu.memref_squeeze %77 : memref<1x!tpu.dma_semaphore, #tpu.memory_space<semaphore_mem>> -> memref<!tpu.dma_semaphore, #tpu.memory_space<semaphore_mem>>
      tpu.wait_dma2 semaphore(%78 : memref<!tpu.dma_semaphore, #tpu.memory_space<semaphore_mem>>) src(%75 : memref<1x128xf32, #tpu.memory_space<any>>) dst(%76 : memref<1x128xf32, #tpu.memory_space<vmem>>)
      %79 = arith.addi %0, %60 : i32
      %80 = arith.index_cast %79 : i32 to index
      %81 = memref.load %arg1[%80] : memref<16xi32, #tpu.memory_space<smem>>
      %c0_i32_51 = arith.constant 0 : i32
      %82 = tpu.memref_slice %arg2[%81, %c0_i32_51] : memref<32x128xf32, #tpu.memory_space<any>> -> memref<1x128xf32, #tpu.memory_space<any>>
      %c0_i32_52 = arith.constant 0 : i32
      %83 = tpu.memref_slice %arg3[%60, %c0_i32_52] : memref<8x128xf32, #tpu.memory_space<vmem>> -> memref<1x128xf32, #tpu.memory_space<vmem>>
      %84 = tpu.memref_slice %arg4[%70] : memref<8x!tpu.dma_semaphore, #tpu.memory_space<semaphore_mem>> -> memref<1x!tpu.dma_semaphore, #tpu.memory_space<semaphore_mem>>
      %85 = tpu.memref_squeeze %84 : memref<1x!tpu.dma_semaphore, #tpu.memory_space<semaphore_mem>> -> memref<!tpu.dma_semaphore, #tpu.memory_space<semaphore_mem>>
      tpu.enqueue_dma source(%82 : memref<1x128xf32, #tpu.memory_space<any>>) target(%83 : memref<1x128xf32, #tpu.memory_space<vmem>>) target_semaphore(%85 : memref<!tpu.dma_semaphore, #tpu.memory_space<semaphore_mem>>)
    }
    %c0_i32_35 = arith.constant 0 : i32
    %c0_i32_36 = arith.constant 0 : i32
    %c8_i32_37 = arith.constant 8 : i32
    %58 = arith.addi %c0_i32_36, %c8_i32_37 : i32
    %c1_i32_38 = arith.constant 1 : i32
    scf.for %arg5 = %c0_i32_36 to %58 step %c1_i32_38  : i32 {
      %c1_i32_40 = arith.constant 1 : i32
      %59 = arith.muli %arg5, %c1_i32_40 : i32
      %c0_i32_41 = arith.constant 0 : i32
      %60 = arith.addi %c0_i32_41, %59 : i32
      %c8_i32_42 = arith.constant 8 : i32
      %c0_i32_43 = arith.constant 0 : i32
      %61 = arith.cmpi eq, %c8_i32_42, %c0_i32_43 : i32
      %c1_i32_44 = arith.constant 1 : i32
      %62 = arith.select %61, %c1_i32_44, %c8_i32_42 : i32
      %63 = arith.remsi %60, %62 : i32
      %c0_i32_45 = arith.constant 0 : i32
      %64 = arith.cmpi ne, %63, %c0_i32_45 : i32
      %c0_i32_46 = arith.constant 0 : i32
      %65 = arith.cmpi slt, %63, %c0_i32_46 : i32
      %c0_i32_47 = arith.constant 0 : i32
      %66 = arith.cmpi slt, %62, %c0_i32_47 : i32
      %67 = arith.xori %65, %66 : i1
      %68 = arith.andi %67, %64 : i1
      %69 = arith.addi %63, %62 : i32
      %70 = arith.select %68, %69, %63 : i32
      %71 = arith.addi %0, %60 : i32
      %72 = arith.index_cast %71 : i32 to index
      %73 = memref.load %arg1[%72] : memref<16xi32, #tpu.memory_space<smem>>
      %c0_i32_48 = arith.constant 0 : i32
      %74 = tpu.memref_slice %arg2[%73, %c0_i32_48] : memref<32x128xf32, #tpu.memory_space<any>> -> memref<1x128xf32, #tpu.memory_space<any>>
      %c0_i32_49 = arith.constant 0 : i32
      %75 = tpu.memref_slice %arg3[%60, %c0_i32_49] : memref<8x128xf32, #tpu.memory_space<vmem>> -> memref<1x128xf32, #tpu.memory_space<vmem>>
      %76 = tpu.memref_slice %arg4[%70] : memref<8x!tpu.dma_semaphore, #tpu.memory_space<semaphore_mem>> -> memref<1x!tpu.dma_semaphore, #tpu.memory_space<semaphore_mem>>
      %77 = tpu.memref_squeeze %76 : memref<1x!tpu.dma_semaphore, #tpu.memory_space<semaphore_mem>> -> memref<!tpu.dma_semaphore, #tpu.memory_space<semaphore_mem>>
      tpu.wait_dma2 semaphore(%77 : memref<!tpu.dma_semaphore, #tpu.memory_space<semaphore_mem>>) src(%74 : memref<1x128xf32, #tpu.memory_space<any>>) dst(%75 : memref<1x128xf32, #tpu.memory_space<vmem>>)
    }
    %c8_i32_39 = arith.constant 8 : i32
    return
  }
  func.func @transform_1(%arg0: i32, %arg1: memref<16xi32, #tpu.memory_space<smem>>) -> (i32, i32) {
    %c0_i32 = arith.constant 0 : i32
    %c0_i32_0 = arith.constant 0 : i32
    return %arg0, %c0_i32 : i32, i32
  }
}

</mosaic_0001>

<llo_original>
// kernel: tpu_custom_call.1
$region0: #{tpu_custom_call.1}
  #allocation0 [shape = 'u32[]', space=smem, size = 0x4, offset = 0x4, fixed_abs, tag = 'smem constant byte address 0x4 - core index']
  #allocation1 [shape = 'u32[72,128]{1,0:T(1,128)}', space=vmem, size = 0x9000, scoped, tag = 'internal scratch']
  #allocation2 [shape = 's32[8]{0}', space=sflag, size = 0x20, scoped, tag = 'scratch operand']
  #allocation3 [shape = 's32[1]{0}', space=sflag, size = 0x4, scoped, tag = 'scoped memory for tpu_custom_call.1']
  #allocation4 [shape = 'u8[512]{0}', space=smem, size = 0x200, scoped, tag = 'prefetched SMEM operand 0']
  #allocation7 [shape = 's32[]', space=sflag, size = 0x4, offset = 0, fixed_abs, tag = 'sflag constant byte address 0x0 - dummy sync flag']
  #allocation8 [shape = 's32[]', space=sflag, size = 0x4, offset = 0, fixed_abs, tag = 'sflag constant byte address 0x0 - dummy sync flag']
  #allocation9 [shape = 'u32[]', space=smem, size = 0x4, offset = 0x44, fixed_abs, tag = 'smem constant byte address 0x44 - assertion arg 0']
  #allocation10 [shape = 'u32[]', space=smem, size = 0x4, offset = 0x48, fixed_abs, tag = 'smem constant byte address 0x48 - assertion arg 1']
  #allocation11 [shape = 's32[]', space=sflag, size = 0x4, offset = 0, fixed_abs, tag = 'sflag constant byte address 0x0 - dummy sync flag']
  #allocation12 [shape = 's32[]', space=sflag, size = 0x4, offset = 0, fixed_abs, tag = 'sflag constant byte address 0x0 - dummy sync flag']
  #allocation13 [shape = 's32[]', space=sflag, size = 0x4, offset = 0, fixed_abs, tag = 'sflag constant byte address 0x0 - dummy sync flag']
  #allocation14 [shape = 's32[]', space=sflag, size = 0x4, offset = 0, fixed_abs, tag = 'sflag constant byte address 0x0 - dummy sync flag']
  #allocation15 [shape = 's32[]', space=sflag, size = 0x4, offset = 0, fixed_abs, tag = 'sflag constant byte address 0x0 - dummy sync flag']
  #allocation16 [shape = 's32[]', space=sflag, size = 0x4, offset = 0, fixed_abs, tag = 'sflag constant byte address 0x0 - dummy sync flag']
  #allocation17 [shape = 's32[]', space=sflag, size = 0x4, offset = 0, fixed_abs, tag = 'sflag constant byte address 0x0 - dummy sync flag']
  #allocation18 [shape = 's32[]', space=sflag, size = 0x4, offset = 0, fixed_abs, tag = 'sflag constant byte address 0x0 - dummy sync flag']
  #allocation19 [shape = 's32[]', space=sflag, size = 0x4, offset = 0, fixed_abs, tag = 'sflag constant byte address 0x0 - dummy sync flag']
  #allocation20 [shape = 's32[]', space=sflag, size = 0x4, offset = 0, fixed_abs, tag = 'sflag constant byte address 0x0 - dummy sync flag']
  #allocation21 [shape = 's32[]', space=sflag, size = 0x4, offset = 0, fixed_abs, tag = 'sflag constant byte address 0x0 - dummy sync flag']
  #allocation22 [shape = 's32[]', space=sflag, size = 0x4, offset = 0, fixed_abs, tag = 'sflag constant byte address 0x0 - dummy sync flag']
  #allocation23 [shape = 's32[]', space=sflag, size = 0x4, offset = 0, fixed_abs, tag = 'sflag constant byte address 0x0 - dummy sync flag']
  #allocation24 [shape = 's32[]', space=sflag, size = 0x4, offset = 0, fixed_abs, tag = 'sflag constant byte address 0x0 - dummy sync flag']
  %s0 = inlined_call_operand.hbm [shape: s32[16], index: 0, kind: input, shape index: {}]
  %s1 = inlined_call_operand.hbm [shape: f32[32,128], index: 1, kind: input, shape index: {}]
  %s2 = inlined_call_operand.hbm [shape: f32[16,128], index: 2, kind: output, shape index: {}]
  %s3 = sld [smem:[#allocation0]]
  $region64: #{tpu_custom_call.1} parent=0
    _
  %s5 = ssub.s32 1, %s3
  %s6 = scalar_select 0, %s5, %s3
  %s8 = sshll.u32 %s0, 4
  %s9 = int_to_ptr.hbm [resolvable:$true] %s8
  %11 = dma.hbm_to_smem %s9, 16, [#allocation4], [#allocation3]
  %13 = dma.done [#allocation3], 16
  %14 = sfence
  $region1: #{tpu_custom_call.1} parent=0
    #allocation5 [shape = 'u8[8192]{0}', space=vmem, size = 0x2000, scoped, tag = 'output window, operand 0']
    #allocation6 [shape = 's32[2]{0}', space=sflag, size = 0x8, scoped, tag = 'scoped memory for tpu_custom_call.1']
    %15 = vsyncpa [#allocation6], 0
    %s16 = scalar_lea.sflag [#allocation6], 1
    %17 = vsyncpa %s16, 0
    loop: start=0, step=1, limit=3
    $region2: #{tpu_custom_call.1} parent=1 // loop_pre_header
      _
    $region3: #{tpu_custom_call.1} parent=1 // loop_header
      %s19 = sphi 0, %s23
      %p20 = scmp.ge.s32.totalorder %s19, 3
      %s28 = sphi 0, %s30
      %s31 = sphi 0, %s28
      %s41 = sphi 0, %s31
    $region4: #{tpu_custom_call.1} parent=1 // loop_header_branch
      %22 = sbr.rel (%p20) target = $region8
    $region5: #{tpu_custom_call.1} parent=1 // loop_body
      %s24 = ssub.s32 %s19, 1
      %s25 = sadd.s32 %s19, 1
      %s26 = ssub.s32 %s19, %s25
      %p27 = scmp.eq.s32.totalorder %s26, 0
      %s29 = sadd.s32 %s28, 1
      %s30 = scalar_select %p27, %s28, %s29
      %p32 = pneg %p27
      %p33 = scmp.eq.s32.totalorder %s19, 1
      %p34 = por %p32, %p33
      %p35 = scmp.ne.s32.totalorder %s28, %s31
      %p36 = scmp.eq.s32.totalorder %s19, 0
      %p37 = por %p35, %p36
      %p38 = scmp.ne.s32.totalorder %s28, %s31
      %p39 = scmp.eq.s32.totalorder %s24, 1
      %p40 = por %p38, %p39
      %p42 = scmp.ne.s32.totalorder %s31, %s41
      %p43 = scmp.eq.s32.totalorder %s24, 0
      %p44 = por %p42, %p43
      %p45 = scmp.lt.s32.totalorder %s19, 2
      // Predicated region
      $region9: #{tpu_custom_call.1} parent=5 // pred_check
        %p46 = pneg %p45
      $region10: #{tpu_custom_call.1} parent=5 // pred_check_branch
        %48 = sbr.rel (%p46) target = $region12
      $region11: #{tpu_custom_call.1} parent=5 // pred_region
        %p49 = pneg %p37
        %p50 = pneg %p34
        %s51 = sand.u32 %s28, 1
        %s52 = scalar_lea.sflag [#allocation6], %s51
        %s53 = sand.u32 %s28, 1
        %s54 = smul.addr %s53, 8
        %s55 = scalar_lea.vmem [#allocation5], %s54
        %s56 = smul.u32 %s19, 8
        %s57 = sld [smem:[#allocation4 + %s56]]
        %s58 = scalar_lea.hbm %s1, %s57
        // Predicated region
        $region13: #{tpu_custom_call.1} parent=11 // pred_check
          _
        $region14: #{tpu_custom_call.1} parent=11 // pred_check_branch
          %60 = sbr.rel target = $region16
        $region15: #{tpu_custom_call.1} parent=11 // pred_region
          %61 = sst [smem:[#allocation9]] [#allocation8]
          %62 = sst [smem:[#allocation10]] [#allocation7]
        $region16: #{tpu_custom_call.1} parent=11 // pred_fallthru
          _
        %64 = shalt.err (0)
        %s66 = sshll.u32 %s58, 4
        %s67 = int_to_ptr.hbm [resolvable:$true] %s66
        %s68 = sshll.u32 %s55, 4
        %s69 = int_to_ptr.vmem [resolvable:$true] %s68
        %71 = dma.hbm_to_vmem [thread:$0]  %s67, 16, %s69, [#allocation2]
        %s72 = sadd.s32 %s56, 1
        %s73 = sld [smem:[#allocation4 + %s72]]
        %s74 = scalar_lea.hbm %s1, %s73
        %s75 = scalar_lea.vmem %s55, 1 [#allocation5]
        %s76 = scalar_lea.sflag [#allocation2], 1
        // Predicated region
        $region17: #{tpu_custom_call.1} parent=11 // pred_check
          _
        $region18: #{tpu_custom_call.1} parent=11 // pred_check_branch
          %78 = sbr.rel target = $region20
        $region19: #{tpu_custom_call.1} parent=11 // pred_region
          %79 = sst [smem:[#allocation9]] [#allocation12]
          %80 = sst [smem:[#allocation10]] [#allocation11]
        $region20: #{tpu_custom_call.1} parent=11 // pred_fallthru
          _
        %82 = shalt.err (0)
        %s84 = sshll.u32 %s74, 4
        %s85 = int_to_ptr.hbm [resolvable:$true] %s84
        %s86 = sshll.u32 %s75, 4
        %s87 = int_to_ptr.vmem [resolvable:$true] %s86
        %89 = dma.hbm_to_vmem [thread:$0]  %s85, 16, %s87, %s76
        %s90 = sadd.s32 %s56, 2
        %s91 = sld [smem:[#allocation4 + %s90]]
        %s92 = scalar_lea.hbm %s1, %s91
        %s93 = scalar_lea.vmem %s55, 2 [#allocation5]
        %s94 = scalar_lea.sflag [#allocation2], 2
        // Predicated region
        $region21: #{tpu_custom_call.1} parent=11 // pred_check
          _
        $region22: #{tpu_custom_call.1} parent=11 // pred_check_branch
          %96 = sbr.rel target = $region24
        $region23: #{tpu_custom_call.1} parent=11 // pred_region
          %97 = sst [smem:[#allocation9]] [#allocation14]
          %98 = sst [smem:[#allocation10]] [#allocation13]
        $region24: #{tpu_custom_call.1} parent=11 // pred_fallthru
          _
        %100 = shalt.err (0)
        %s102 = sshll.u32 %s92, 4
        %s103 = int_to_ptr.hbm [resolvable:$true] %s102
        %s104 = sshll.u32 %s93, 4
        %s105 = int_to_ptr.vmem [resolvable:$true] %s104
        %107 = dma.hbm_to_vmem [thread:$0]  %s103, 16, %s105, %s94
        %s108 = sadd.s32 %s56, 3
        %s109 = sld [smem:[#allocation4 + %s108]]
        %s110 = scalar_lea.hbm %s1, %s109
        %s111 = scalar_lea.vmem %s55, 3 [#allocation5]
        %s112 = scalar_lea.sflag [#allocation2], 3
        // Predicated region
        $region25: #{tpu_custom_call.1} parent=11 // pred_check
          _
        $region26: #{tpu_custom_call.1} parent=11 // pred_check_branch
          %114 = sbr.rel target = $region28
        $region27: #{tpu_custom_call.1} parent=11 // pred_region
          %115 = sst [smem:[#allocation9]] [#allocation16]
          %116 = sst [smem:[#allocation10]] [#allocation15]
        $region28: #{tpu_custom_call.1} parent=11 // pred_fallthru
          _
        %118 = shalt.err (0)
        %s120 = sshll.u32 %s110, 4
        %s121 = int_to_ptr.hbm [resolvable:$true] %s120
        %s122 = sshll.u32 %s111, 4
        %s123 = int_to_ptr.vmem [resolvable:$true] %s122
        %125 = dma.hbm_to_vmem [thread:$0]  %s121, 16, %s123, %s112
        %s126 = sadd.s32 %s56, 4
        %s127 = sld [smem:[#allocation4 + %s126]]
        %s128 = scalar_lea.hbm %s1, %s127
        %s129 = scalar_lea.vmem %s55, 4 [#allocation5]
        %s130 = scalar_lea.sflag [#allocation2], 4
        // Predicated region
        $region29: #{tpu_custom_call.1} parent=11 // pred_check
          _
        $region30: #{tpu_custom_call.1} parent=11 // pred_check_branch
          %132 = sbr.rel target = $region32
        $region31: #{tpu_custom_call.1} parent=11 // pred_region
          %133 = sst [smem:[#allocation9]] [#allocation18]
          %134 = sst [smem:[#allocation10]] [#allocation17]
        $region32: #{tpu_custom_call.1} parent=11 // pred_fallthru
          _
        %136 = shalt.err (0)
        %s138 = sshll.u32 %s128, 4
        %s139 = int_to_ptr.hbm [resolvable:$true] %s138
        %s140 = sshll.u32 %s129, 4
        %s141 = int_to_ptr.vmem [resolvable:$true] %s140
        %143 = dma.hbm_to_vmem [thread:$0]  %s139, 16, %s141, %s130
        %s144 = sadd.s32 %s56, 5
        %s145 = sld [smem:[#allocation4 + %s144]]
        %s146 = scalar_lea.hbm %s1, %s145
        %s147 = scalar_lea.vmem %s55, 5 [#allocation5]
        %s148 = scalar_lea.sflag [#allocation2], 5
        // Predicated region
        $region33: #{tpu_custom_call.1} parent=11 // pred_check
          _
        $region34: #{tpu_custom_call.1} parent=11 // pred_check_branch
          %150 = sbr.rel target = $region36
        $region35: #{tpu_custom_call.1} parent=11 // pred_region
          %151 = sst [smem:[#allocation9]] [#allocation20]
          %152 = sst [smem:[#allocation10]] [#allocation19]
        $region36: #{tpu_custom_call.1} parent=11 // pred_fallthru
          _
        %154 = shalt.err (0)
        %s156 = sshll.u32 %s146, 4
        %s157 = int_to_ptr.hbm [resolvable:$true] %s156
        %s158 = sshll.u32 %s147, 4
        %s159 = int_to_ptr.vmem [resolvable:$true] %s158
        %161 = dma.hbm_to_vmem [thread:$0]  %s157, 16, %s159, %s148
        %s162 = sadd.s32 %s56, 6
        %s163 = sld [smem:[#allocation4 + %s162]]
        %s164 = scalar_lea.hbm %s1, %s163
        %s165 = scalar_lea.vmem %s55, 6 [#allocation5]
        %s166 = scalar_lea.sflag [#allocation2], 6
        // Predicated region
        $region37: #{tpu_custom_call.1} parent=11 // pred_check
          _
        $region38: #{tpu_custom_call.1} parent=11 // pred_check_branch
          %168 = sbr.rel target = $region40
        $region39: #{tpu_custom_call.1} parent=11 // pred_region
          %169 = sst [smem:[#allocation9]] [#allocation22]
          %170 = sst [smem:[#allocation10]] [#allocation21]
        $region40: #{tpu_custom_call.1} parent=11 // pred_fallthru
          _
        %172 = shalt.err (0)
        %s174 = sshll.u32 %s164, 4
        %s175 = int_to_ptr.hbm [resolvable:$true] %s174
        %s176 = sshll.u32 %s165, 4
        %s177 = int_to_ptr.vmem [resolvable:$true] %s176
        %179 = dma.hbm_to_vmem [thread:$0]  %s175, 16, %s177, %s166
        %s180 = sadd.s32 %s56, 7
        %s181 = sld [smem:[#allocation4 + %s180]]
        %s182 = scalar_lea.hbm %s1, %s181
        %s183 = scalar_lea.vmem %s55, 7 [#allocation5]
        %s184 = scalar_lea.sflag [#allocation2], 7
        // Predicated region
        $region41: #{tpu_custom_call.1} parent=11 // pred_check
          _
        $region42: #{tpu_custom_call.1} parent=11 // pred_check_branch
          %186 = sbr.rel target = $region44
        $region43: #{tpu_custom_call.1} parent=11 // pred_region
          %187 = sst [smem:[#allocation9]] [#allocation24]
          %188 = sst [smem:[#allocation10]] [#allocation23]
        $region44: #{tpu_custom_call.1} parent=11 // pred_fallthru
          _
        %190 = shalt.err (0)
        %s192 = sshll.u32 %s182, 4
        %s193 = int_to_ptr.hbm [resolvable:$true] %s192
        %s194 = sshll.u32 %s183, 4
        %s195 = int_to_ptr.vmem [resolvable:$true] %s194
        %197 = dma.hbm_to_vmem [thread:$0]  %s193, 16, %s195, %s184
        loop: start=0, step=1, limit=8
        $region45: #{tpu_custom_call.1} parent=11 // loop_pre_header
          _
        $region46: #{tpu_custom_call.1} parent=11 // loop_header
          %s199 = sphi 0, %s203
          %p200 = scmp.ge.s32.totalorder %s199, 8
        $region47: #{tpu_custom_call.1} parent=11 // loop_header_branch
          %202 = sbr.rel (%p200) target = $region51
        $region48: #{tpu_custom_call.1} parent=11 // loop_body
          %p204 = scmp.lt.s32.totalorder %s199, 0
          %s205 = ssub.s32 0, %s199
          %s206 = scalar_select %p204, %s205, %s199
          %s207 = sand.u32 %s206, 7
          %s208 = ssub.s32 0, %s207
          %s209 = scalar_select %p204, %s208, %s207
          %p210 = scmp.ne.s32.totalorder %s209, 0
          %p211 = scmp.lt.s32.totalorder %s209, 0
          %p212 = pnand %p211, %p210
          %p213 = pneg %p212
          %s214 = sadd.s32 %s209, 8
          %s215 = scalar_select %p213, %s214, %s209
          %s216 = sadd.s32 %s56, %s199
          %s217 = sld [smem:[#allocation4 + %s216]]
          %s218 = scalar_lea.sflag [#allocation2], %s215
          %s219 = smul.u32 1, 1
          %s220 = sshll.u32 %s219, 4
          %221 = dma.done %s218, %s220
        $region49: #{tpu_custom_call.1} parent=11 // loop_footer
          %s203 = sadd.s32 1, %s199
        $region50: #{tpu_custom_call.1} parent=11 // loop_footer_branch
          %198 = sbr.rel target = $region46
        $region51: #{tpu_custom_call.1} parent=11 // loop_exit
          _
        %s222 = sand.u32 %s28, 1
        %s223 = scalar_lea.sflag [#allocation6], %s222
        %s224 = sand.u32 %s28, 1
        %s225 = smul.addr %s224, 8
        %s226 = scalar_lea.vmem [#allocation5], %s225
        // Predicated region
        $region52: #{tpu_custom_call.1} parent=11 // pred_check
          %p227 = pneg %p34
        $region53: #{tpu_custom_call.1} parent=11 // pred_check_branch
          %229 = sbr.rel (%p227) target = $region55
        $region54: #{tpu_custom_call.1} parent=11 // pred_region
          %231 = vsyncadd %s223, 0
          %s232 = smul.addr %s19, 8
          %s233 = scalar_lea.hbm %s2, %s232
          %s235 = sshll.u32 %s226, 4
          %s236 = int_to_ptr.vmem [resolvable:$true] %s235
          %s237 = sshll.u32 %s233, 4
          %s238 = int_to_ptr.hbm [resolvable:$true] %s237
          %240 = dma.vmem_to_hbm [thread:$0]  %s236, 128, %s238, %s223
        $region55: #{tpu_custom_call.1} parent=11 // pred_fallthru
          _
      $region12: #{tpu_custom_call.1} parent=5 // pred_fallthru
        _
      %p241 = scmp.le.s32.totalorder 1, %s19
      // Predicated region
      $region56: #{tpu_custom_call.1} parent=5 // pred_check
        %p242 = pneg %p241
      $region57: #{tpu_custom_call.1} parent=5 // pred_check_branch
        %244 = sbr.rel (%p242) target = $region59
      $region58: #{tpu_custom_call.1} parent=5 // pred_region
        %s245 = ssub.s32 %s19, 1
        // Predicated region
        $region60: #{tpu_custom_call.1} parent=58 // pred_check
          %p246 = pneg %p40
        $region61: #{tpu_custom_call.1} parent=58 // pred_check_branch
          %248 = sbr.rel (%p246) target = $region63
        $region62: #{tpu_custom_call.1} parent=58 // pred_region
          %s249 = sand.u32 %s31, 1
          %s250 = scalar_lea.sflag [#allocation6], %s249
          %s251 = sand.u32 %s31, 1
          %s252 = smul.addr %s251, 8
          %s253 = scalar_lea.vmem [#allocation5], %s252
          %255 = dma.done %s250, 128
        $region63: #{tpu_custom_call.1} parent=58 // pred_fallthru
          _
      $region59: #{tpu_custom_call.1} parent=5 // pred_fallthru
        _
    $region6: #{tpu_custom_call.1} parent=1 // loop_footer
      %s23 = sadd.s32 1, %s19
    $region7: #{tpu_custom_call.1} parent=1 // loop_footer_branch
      %18 = sbr.rel target = $region3
    $region8: #{tpu_custom_call.1} parent=1 // loop_exit
      _
    %256 = vsyncpa [#allocation6], 1
    %s257 = scalar_lea.sflag [#allocation6], 1
    %258 = vsyncpa %s257, 1
  %259 = vsyncmov [#allocation2]
  %s260 = vpop.sfrf %259
  %p261 = scmp.eq.s32.totalorder %s260, 0
  %p262 = pneg %p261
  %264 = shalt.err (%p262)
  %s265 = scalar_lea.sflag [#allocation2], 1
  %266 = vsyncmov %s265
  %s267 = vpop.sfrf %266
  %p268 = scmp.eq.s32.totalorder %s267, 0
  %p269 = pneg %p268
  %271 = shalt.err (%p269)
  %s272 = scalar_lea.sflag [#allocation2], 2
  %273 = vsyncmov %s272
  %s274 = vpop.sfrf %273
  %p275 = scmp.eq.s32.totalorder %s274, 0
  %p276 = pneg %p275
  %278 = shalt.err (%p276)
  %s279 = scalar_lea.sflag [#allocation2], 3
  %280 = vsyncmov %s279
  %s281 = vpop.sfrf %280
  %p282 = scmp.eq.s32.totalorder %s281, 0
  %p283 = pneg %p282
  %285 = shalt.err (%p283)
  %s286 = scalar_lea.sflag [#allocation2], 4
  %287 = vsyncmov %s286
  %s288 = vpop.sfrf %287
  %p289 = scmp.eq.s32.totalorder %s288, 0
  %p290 = pneg %p289
  %292 = shalt.err (%p290)
  %s293 = scalar_lea.sflag [#allocation2], 5
  %294 = vsyncmov %s293
  %s295 = vpop.sfrf %294
  %p296 = scmp.eq.s32.totalorder %s295, 0
  %p297 = pneg %p296
  %299 = shalt.err (%p297)
  %s300 = scalar_lea.sflag [#allocation2], 6
  %301 = vsyncmov %s300
  %s302 = vpop.sfrf %301
  %p303 = scmp.eq.s32.totalorder %s302, 0
  %p304 = pneg %p303
  %306 = shalt.err (%p304)
  %s307 = scalar_lea.sflag [#allocation2], 7
  %308 = vsyncmov %s307
  %s309 = vpop.sfrf %308
  %p310 = scmp.eq.s32.totalorder %s309, 0
  %p311 = pneg %p310
  %313 = shalt.err (%p311)

</llo_original>
